<compile_context>
chip_gen: v7x
topology: tpu7x:2x2x1
jax: 0.10.0
libtpu: 0.0.40
codegen_flags: <defaults>
</compile_context>

<pallas_src>
import functools

import jax
import jax.numpy as jnp
from jax.experimental import pallas as pl
from jax.experimental.pallas import tpu as pltpu


_TK_TARGET = 512                 # sublane tile of the C*H reduction axis
_MAX_BLOCK_ELEMS = 512 * 1024    # ~2 MiB (f32) per input buffer


def _largest_divisor_leq(n, cap):
    cap = max(1, min(n, cap))
    for d in range(cap, 0, -1):
        if n % d == 0:
            return d
    return 1


# ----------------------------- kernel ----------------------------------------


def _test_loss_kernel(x_ref, out_ref, psum_ref, acc_ref, *,
                      inv_h, ch, tk, needs_mask, eps):
    b = pl.program_id(1)            # batch-row group within this core shard
    k = pl.program_id(2)            # C*H reduction tile (innermost)
    nb = pl.num_programs(1)
    nk = pl.num_programs(2)

    # Zero the per-lane log accumulator once per core shard.
    @pl.when(jnp.logical_and(b == 0, k == 0))
    def _():
        acc_ref[...] = jnp.zeros_like(acc_ref)

    # Zero the partial-sum scratch at the start of every batch-row group.
    @pl.when(k == 0)
    def _():
        psum_ref[...] = jnp.zeros_like(psum_ref)

    xf = x_ref[...].astype(jnp.float32)              # (GB, TK, W)
    if needs_mask:                                    # static: only if TK !| C*H
        row = jax.lax.broadcasted_iota(jnp.int32, xf.shape, 1)
        xf = jnp.where(k * tk + row < ch, xf, 0.0)
    psum_ref[...] += jnp.sum(xf, axis=1)             # (GB, W): partial C,H sum

    # End of the C*H reduction for this row group: log of the mean-over-H,
    # folded into the per-lane accumulator.
    @pl.when(k == nk - 1)
    def _():
        logs = jnp.log(psum_ref[...] * inv_h + eps)              # (GB, W)
        acc_ref[...] += jnp.sum(logs, axis=0, keepdims=True)     # (1, W)

    # Last step of this core shard: emit the raw (un-normalised) log-sum.
    @pl.when(jnp.logical_and(b == nb - 1, k == nk - 1))
    def _():
        out_ref[...] = jnp.sum(acc_ref[...], keepdims=True)[None]   # (1, 1, 1)


# ----------------------------- wrapper ----------------------------------------


def test_loss(x, *, eps=1e-7):
    """Pallas implementation of TestLoss.forward for NCHW input."""
    assert x.ndim == 4, "expected (B, C, H, W) input"
    B, C, H, W = x.shape
    CH = C * H
    x3 = x.reshape(B, CH, W)         # free reshape; W stays on the lane axis

    # Reduction tile over C*H: multiple of 8, or the full dim if smaller.
    TK = CH if CH <= _TK_TARGET else _TK_TARGET
    K = pl.cdiv(CH, TK)
    needs_mask = (CH % TK) != 0

    # Split B across the two TensorCores on v7x; harmless on 1-TC chips.
    NP = 2 if (B >= 2 and B % 2 == 0) else 1
    Bc = B // NP

    # Pack several batch rows per grid step when per-row slabs are small.
    gb_cap = max(1, _MAX_BLOCK_ELEMS // max(TK * W, 1))
    GB = _largest_divisor_leq(Bc, gb_cap)
    BG = Bc // GB                    # batch-row groups per core shard

    kernel = functools.partial(
        _test_loss_kernel, inv_h=1.0 / H, ch=CH, tk=TK,
        needs_mask=needs_mask, eps=eps)

    partials = pl.pallas_call(
        kernel,
        out_shape=jax.ShapeDtypeStruct((NP, 1, 1), jnp.float32),
        grid=(NP, BG, K),            # reduction axis innermost
        in_specs=[pl.BlockSpec((GB, TK, W),
                               lambda p, b, k: (p * BG + b, k, 0))],
        out_specs=pl.BlockSpec((1, 1, 1), lambda p, b, k: (p, 0, 0)),
        scratch_shapes=[pltpu.VMEM((GB, W), jnp.float32),   # partial sums
                        pltpu.VMEM((1, W), jnp.float32)],   # log accumulator
        compiler_params=pltpu.CompilerParams(
            dimension_semantics=("parallel", "arbitrary", "arbitrary"),
            vmem_limit_bytes=32 * 1024 * 1024),
        cost_estimate=pl.CostEstimate(
            flops=int(x.size) + 4 * B * W,
            transcendentals=B * W,
            bytes_accessed=int(x.size) * x.dtype.itemsize + NP * 4),
    )(x3)

    # Combine per-core partial log-sums and normalise.
    # TODO(synk): if profiling shows exposed DMA latency at this tile size, add
    # pipeline_mode=pl.Buffered(3) on the input BlockSpec.
    return jnp.sum(partials) * (1.0 / (B * W))


# ----------------------------- reference & main --------------------------------


def test_loss_ref(x, eps=1e-7):
    s = x.sum(axis=1)          # sum over C   -> (B, H, W)
    m = s.mean(axis=1)         # mean over H  -> (B, W)
    return jnp.log(m + eps).mean()


if __name__ == "__main__":
    key = jax.random.PRNGKey(0)
    # Positive activations so log() is well-defined (as in the loss's intended use).
    x = jax.random.uniform(key, (2, 4, 16, 16), dtype=jnp.float32,
                           minval=0.05, maxval=1.0)
    out = jax.block_until_ready(test_loss(x))
    ref = test_loss_ref(x)
    assert out.shape == ref.shape
    assert jnp.allclose(out, ref, atol=1e-5, rtol=1e-5), (out, ref)

    # Exercise the tiled-reduction / masked-tail / row-packing path
    # (C*H > TK and not a multiple of TK, odd B -> single core shard, W != 128k).
    x2 = jax.random.uniform(jax.random.PRNGKey(1), (3, 5, 121, 20),
                            dtype=jnp.float32, minval=0.05, maxval=1.0)
    out2 = jax.block_until_ready(test_loss(x2))
    ref2 = test_loss_ref(x2)
    assert jnp.allclose(out2, ref2, atol=1e-5, rtol=1e-5), (out2, ref2)

    print("KERNEL_OK")
</pallas_src>

<mosaic_0001>
module attributes {stable_mosaic.version = 11 : i64} {
  func.func @_test_loss_kernel(%arg0: i32, %arg1: i32, %arg2: i32, %arg3: memref<1x64x16xf32, #tpu.memory_space<vmem>>, %arg4: memref<1x1x1xf32, #tpu.memory_space<vmem>>, %arg5: memref<1x16xf32, #tpu.memory_space<vmem>>, %arg6: memref<1x16xf32, #tpu.memory_space<vmem>>) attributes {dimension_semantics = [#tpu.dimension_semantics<parallel>, #tpu.dimension_semantics<arbitrary>, #tpu.dimension_semantics<arbitrary>], iteration_bounds = array<i64: 2, 1, 1>, scalar_prefetch = 0 : i64, scratch_operands = 2 : i64, tpu.core_type = #tpu.core_type<tc>, window_params = [{transform_indices = @transform_0, window_bounds = array<i64: 1, 64, 16>}, {transform_indices = @transform_1, window_bounds = array<i64: 1, 1, 1>}]} {
    %c0_i32 = arith.constant 0 : i32
    %0 = arith.cmpi eq, %arg1, %c0_i32 : i32
    %c0_i32_0 = arith.constant 0 : i32
    %1 = arith.cmpi eq, %arg2, %c0_i32_0 : i32
    %2 = arith.andi %0, %1 : i1
    %3 = arith.extui %2 : i1 to i32
    %c0_i32_1 = arith.constant 0 : i32
    %4 = arith.cmpi ne, %3, %c0_i32_1 : i32
    scf.if %4 {
      %cst_15 = arith.constant 0.000000e+00 : f32
      %21 = vector.broadcast %cst_15 : f32 to vector<1x16xf32>
      %c0_16 = arith.constant 0 : index
      %c0_17 = arith.constant 0 : index
      %22 = vector.load %arg6[%c0_16, %c0_17] : memref<1x16xf32, #tpu.memory_space<vmem>>, vector<1x16xf32>
      tpu.vector_store %arg6[%c0_16, %c0_17], %21 {strides = array<i32>} : memref<1x16xf32, #tpu.memory_space<vmem>>, vector<1x16xf32>,
    } else {
    }
    %c0_i32_2 = arith.constant 0 : i32
    %5 = arith.cmpi eq, %arg2, %c0_i32_2 : i32
    %6 = arith.extui %5 : i1 to i32
    %c0_i32_3 = arith.constant 0 : i32
    %7 = arith.cmpi ne, %6, %c0_i32_3 : i32
    scf.if %7 {
      %cst_15 = arith.constant 0.000000e+00 : f32
      %21 = vector.broadcast %cst_15 : f32 to vector<1x16xf32>
      %c0_16 = arith.constant 0 : index
      %c0_17 = arith.constant 0 : index
      %22 = vector.load %arg5[%c0_16, %c0_17] : memref<1x16xf32, #tpu.memory_space<vmem>>, vector<1x16xf32>
      tpu.vector_store %arg5[%c0_16, %c0_17], %21 {strides = array<i32>} : memref<1x16xf32, #tpu.memory_space<vmem>>, vector<1x16xf32>,
    } else {
    }
    %c0 = arith.constant 0 : index
    %c0_4 = arith.constant 0 : index
    %c0_5 = arith.constant 0 : index
    %8 = vector.load %arg3[%c0, %c0_4, %c0_5] : memref<1x64x16xf32, #tpu.memory_space<vmem>>, vector<1x64x16xf32>
    %c0_6 = arith.constant 0 : index
    %c0_7 = arith.constant 0 : index
    %9 = vector.load %arg5[%c0_6, %c0_7] : memref<1x16xf32, #tpu.memory_space<vmem>>, vector<1x16xf32>
    %cst = arith.constant dense<0.000000e+00> : vector<1x16xf32>
    %10 = vector.multi_reduction <add>, %8, %cst [1] : vector<1x64x16xf32> to vector<1x16xf32>
    %11 = arith.addf %9, %10 : vector<1x16xf32>
    %c0_8 = arith.constant 0 : index
    %c0_9 = arith.constant 0 : index
    %12 = vector.load %arg5[%c0_8, %c0_9] : memref<1x16xf32, #tpu.memory_space<vmem>>, vector<1x16xf32>
    tpu.vector_store %arg5[%c0_8, %c0_9], %11 {strides = array<i32>} : memref<1x16xf32, #tpu.memory_space<vmem>>, vector<1x16xf32>,
    %c0_i32_10 = arith.constant 0 : i32
    %13 = arith.cmpi eq, %arg2, %c0_i32_10 : i32
    %14 = arith.extui %13 : i1 to i32
    %c0_i32_11 = arith.constant 0 : i32
    %15 = arith.cmpi ne, %14, %c0_i32_11 : i32
    scf.if %15 {
      %c0_15 = arith.constant 0 : index
      %c0_16 = arith.constant 0 : index
      %21 = vector.load %arg5[%c0_15, %c0_16] : memref<1x16xf32, #tpu.memory_space<vmem>>, vector<1x16xf32>
      %cst_17 = arith.constant 6.250000e-02 : f32
      %22 = vector.broadcast %cst_17 : f32 to vector<1x16xf32>
      %23 = arith.mulf %21, %22 : vector<1x16xf32>
      %cst_18 = arith.constant 1.000000e-07 : f32
      %24 = vector.broadcast %cst_18 : f32 to vector<1x16xf32>
      %25 = arith.addf %23, %24 : vector<1x16xf32>
      %26 = math.log %25 : vector<1x16xf32>
      %c0_19 = arith.constant 0 : index
      %c0_20 = arith.constant 0 : index
      %27 = vector.load %arg6[%c0_19, %c0_20] : memref<1x16xf32, #tpu.memory_space<vmem>>, vector<1x16xf32>
      %cst_21 = arith.constant dense<0.000000e+00> : vector<16xf32>
      %28 = vector.multi_reduction <add>, %26, %cst_21 [0] : vector<1x16xf32> to vector<16xf32>
      %29 = vector.shape_cast %28 : vector<16xf32> to vector<1x16xf32>
      %30 = arith.addf %27, %29 : vector<1x16xf32>
      %c0_22 = arith.constant 0 : index
      %c0_23 = arith.constant 0 : index
      %31 = vector.load %arg6[%c0_22, %c0_23] : memref<1x16xf32, #tpu.memory_space<vmem>>, vector<1x16xf32>
      tpu.vector_store %arg6[%c0_22, %c0_23], %30 {strides = array<i32>} : memref<1x16xf32, #tpu.memory_space<vmem>>, vector<1x16xf32>,
    } else {
    }
    %c0_i32_12 = arith.constant 0 : i32
    %16 = arith.cmpi eq, %arg1, %c0_i32_12 : i32
    %c0_i32_13 = arith.constant 0 : i32
    %17 = arith.cmpi eq, %arg2, %c0_i32_13 : i32
    %18 = arith.andi %16, %17 : i1
    %19 = arith.extui %18 : i1 to i32
    %c0_i32_14 = arith.constant 0 : i32
    %20 = arith.cmpi ne, %19, %c0_i32_14 : i32
    scf.if %20 {
      %c0_15 = arith.constant 0 : index
      %c0_16 = arith.constant 0 : index
      %21 = vector.load %arg6[%c0_15, %c0_16] : memref<1x16xf32, #tpu.memory_space<vmem>>, vector<1x16xf32>
      %22 = vector.shape_cast %21 : vector<1x16xf32> to vector<1x1x16xf32>
      %cst_17 = arith.constant dense<0.000000e+00> : vector<1xf32>
      %23 = vector.multi_reduction <add>, %22, %cst_17 [1, 2] : vector<1x1x16xf32> to vector<1xf32>
      %24 = vector.shape_cast %23 : vector<1xf32> to vector<1x1x1xf32>
      %25 = vector.extract %24[0, 0, 0] : f32 from vector<1x1x1xf32>
      %26 = vector.broadcast %25 : f32 to vector<1x1xf32>
      %27 = vector.shape_cast %26 : vector<1x1xf32> to vector<1x1x1xf32>
      %c0_18 = arith.constant 0 : index
      %c0_19 = arith.constant 0 : index
      %c0_20 = arith.constant 0 : index
      %28 = vector.load %arg4[%c0_18, %c0_19, %c0_20] : memref<1x1x1xf32, #tpu.memory_space<vmem>>, vector<1x1x1xf32>
      tpu.vector_store %arg4[%c0_18, %c0_19, %c0_20], %27 {strides = array<i32>} : memref<1x1x1xf32, #tpu.memory_space<vmem>>, vector<1x1x1xf32>,
    } else {
    }
    return
  }
  func.func @transform_0(%arg0: i32, %arg1: i32, %arg2: i32) -> (i32, i32, i32) {
    %c1_i32 = arith.constant 1 : i32
    %0 = arith.muli %arg0, %c1_i32 : i32
    %1 = arith.addi %0, %arg1 : i32
    %c0_i32 = arith.constant 0 : i32
    %c0_i32_0 = arith.constant 0 : i32
    return %1, %arg2, %c0_i32 : i32, i32, i32
  }
  func.func @transform_1(%arg0: i32, %arg1: i32, %arg2: i32) -> (i32, i32, i32) {
    %c0_i32 = arith.constant 0 : i32
    %c0_i32_0 = arith.constant 0 : i32
    %c0_i32_1 = arith.constant 0 : i32
    return %arg0, %c0_i32, %c0_i32_0 : i32, i32, i32
  }
}

</mosaic_0001>

<llo_original>
// kernel: tpu_custom_call.1
$region0: #{tpu_custom_call.1}
  #allocation0 [shape = 'u32[]', space=smem, size = 0x4, offset = 0x4, fixed_abs, tag = 'smem constant byte address 0x4 - core index']
  #allocation1 [shape = 'u32[144,128]{1,0:T(1,128)}', space=vmem, size = 0x12000, scoped, tag = 'internal scratch']
  #allocation2 [shape = 'f32[1,16]{1,0:T(1,128)}', space=vmem, size = 0x200, scoped, tag = 'scratch operand']
  #allocation3 [shape = 'f32[1,16]{1,0:T(1,128)}', space=vmem, size = 0x200, scoped, tag = 'scratch operand']
  %s0 = inlined_call_operand.vmem [shape: f32[2,64,16], index: 0, kind: input, shape index: {}]
  %s1 = inlined_call_operand.vmem [shape: f32[2,1,1], index: 1, kind: output, shape index: {}]
  %s2 = sld [smem:[#allocation0]]
  $region53: #{tpu_custom_call.1} parent=0
    _
  %s4 = ssub.s32 1, %s2
  %s5 = scalar_select 0, %s4, %s2
  loop: start=0, step=1, limit=4
  $region2: #{tpu_custom_call.1} parent=0 // loop_pre_header
    _
  $region3: #{tpu_custom_call.1} parent=0 // loop_header
    %s7 = sphi 0, %s11
    %p8 = scmp.ge.s32.totalorder %s7, 4
    %s14 = sphi 0, %s33
    %s15 = sphi 0, %s29
    %s16 = sphi 0, %s25
    %s17 = sphi 0, %s14
    %s18 = sphi 0, %s15
    %s19 = sphi 0, %s16
    %s20 = sphi 0, %s17
    %s21 = sphi 0, %s18
    %s22 = sphi 0, %s19
    %s40 = sphi 0, %s42
    %s43 = sphi 0, %s40
    %s44 = sphi 0, %s43
    %s60 = sphi 0, %s44
    %s66 = sphi 0, %s68
    %s69 = sphi 0, %s66
    %s70 = sphi 0, %s69
    %s86 = sphi 0, %s70
  $region4: #{tpu_custom_call.1} parent=0 // loop_header_branch
    %10 = sbr.rel (%p8) target = $region8
  $region5: #{tpu_custom_call.1} parent=0 // loop_body
    %s12 = ssub.s32 %s7, 1
    %s13 = ssub.s32 %s7, 2
    %s23 = sadd.s32 1, %s16
    %p24 = scmp.ge.s32.totalorder %s23, 1
    %s25 = scalar_select %p24, 0, %s23
    %s26 = sadd.s32 1, %s15
    %s27 = scalar_select %p24, %s26, %s15
    %p28 = scmp.ge.s32.totalorder %s27, 1
    %s29 = scalar_select %p28, 0, %s27
    %s30 = sadd.s32 1, %s14
    %s31 = scalar_select %p28, %s30, %s14
    %p32 = scmp.ge.s32.totalorder %s31, 2
    %s33 = scalar_select %p32, 0, %s31
    %s34 = sadd.s32 %s14, %s15
    %s35 = sadd.s32 %s33, %s29
    %s36 = ssub.s32 %s34, %s35
    %s37 = ssub.s32 %s16, %s25
    %s38 = sor.u32 %s36, %s37
    %p39 = scmp.eq.s32.totalorder %s38, 0
    %s41 = sadd.s32 %s40, 1
    %s42 = scalar_select %p39, %s40, %s41
    %p45 = pneg %p39
    %p46 = scmp.eq.s32.totalorder %s7, 1
    %p47 = por %p45, %p46
    %p48 = scmp.ne.s32.totalorder %s40, %s43
    %p49 = scmp.eq.s32.totalorder %s7, 0
    %p50 = por %p48, %p49
    %p51 = scmp.ne.s32.totalorder %s40, %s43
    %p52 = scmp.eq.s32.totalorder %s12, 1
    %p53 = por %p51, %p52
    %p54 = scmp.ne.s32.totalorder %s43, %s44
    %p55 = scmp.eq.s32.totalorder %s12, 0
    %p56 = por %p54, %p55
    %p57 = scmp.ne.s32.totalorder %s43, %s44
    %p58 = scmp.eq.s32.totalorder %s13, 1
    %p59 = por %p57, %p58
    %p61 = scmp.ne.s32.totalorder %s44, %s60
    %p62 = scmp.eq.s32.totalorder %s13, 0
    %p63 = por %p61, %p62
    %s64 = ssub.s32 %s14, %s33
    %p65 = scmp.eq.s32.totalorder %s64, 0
    %s67 = sadd.s32 %s66, 1
    %s68 = scalar_select %p65, %s66, %s67
    %p71 = pneg %p65
    %p72 = scmp.eq.s32.totalorder %s7, 1
    %p73 = por %p71, %p72
    %p74 = scmp.ne.s32.totalorder %s66, %s69
    %p75 = scmp.eq.s32.totalorder %s7, 0
    %p76 = por %p74, %p75
    %p77 = scmp.ne.s32.totalorder %s66, %s69
    %p78 = scmp.eq.s32.totalorder %s12, 1
    %p79 = por %p77, %p78
    %p80 = scmp.ne.s32.totalorder %s69, %s70
    %p81 = scmp.eq.s32.totalorder %s12, 0
    %p82 = por %p80, %p81
    %p83 = scmp.ne.s32.totalorder %s69, %s70
    %p84 = scmp.eq.s32.totalorder %s13, 1
    %p85 = por %p83, %p84
    %p87 = scmp.ne.s32.totalorder %s70, %s86
    %p88 = scmp.eq.s32.totalorder %s13, 0
    %p89 = por %p87, %p88
    %p90 = scmp.le.s32.totalorder 1, %s7
    %p91 = scmp.lt.s32.totalorder %s7, 3
    %p92 = pnand %p90, %p91
    %p93 = pneg %p92
    // Predicated region
    $region9: #{tpu_custom_call.1} parent=5 // pred_check
      _
    $region10: #{tpu_custom_call.1} parent=5 // pred_check_branch
      %95 = sbr.rel (%p92) target = $region12
    $region11: #{tpu_custom_call.1} parent=5 // pred_region
      %s96 = ssub.s32 %s7, 1
    $region12: #{tpu_custom_call.1} parent=5 // pred_fallthru
      _
    %p97 = scmp.lt.s32.totalorder %s7, 2
    // Predicated region
    $region13: #{tpu_custom_call.1} parent=5 // pred_check
      %p98 = pneg %p97
    $region14: #{tpu_custom_call.1} parent=5 // pred_check_branch
      %100 = sbr.rel (%p98) target = $region16
    $region15: #{tpu_custom_call.1} parent=5 // pred_region
      // Predicated region
      $region17: #{tpu_custom_call.1} parent=15 // pred_check
        %p101 = pneg %p50
      $region18: #{tpu_custom_call.1} parent=15 // pred_check_branch
        %103 = sbr.rel (%p101) target = $region20
      $region19: #{tpu_custom_call.1} parent=15 // pred_region
        %s104 = sadd.s32 %s14, %s15
        %s105 = smul.u32 8, %s16
        %p106 = scmp.lt.s32.totalorder %s104, 1
        %s107 = scalar_select %p106, %s104, 1
        %p108 = scmp.lt.s32.totalorder %s105, 7
        %s109 = scalar_select %p108, %s105, 7
        %s110 = smul.addr %s107, 8
        %s111 = sadd.s32 %s109, %s110
        %s112 = smul.addr %s111, 8
        %s113 = scalar_lea.vmem %s0, %s112
        %s114 = sadd.s32 %s14, %s15
        %s115 = smul.u32 8, %s16
      $region20: #{tpu_custom_call.1} parent=15 // pred_fallthru
        _
    $region16: #{tpu_custom_call.1} parent=5 // pred_fallthru
      _
    %p116 = scmp.le.s32.totalorder 1, %s7
    %p117 = scmp.lt.s32.totalorder %s7, 3
    %p118 = pnand %p116, %p117
    %p119 = pneg %p118
    // Predicated region
    $region21: #{tpu_custom_call.1} parent=5 // pred_check
      _
    $region22: #{tpu_custom_call.1} parent=5 // pred_check_branch
      %121 = sbr.rel (%p118) target = $region24
    $region23: #{tpu_custom_call.1} parent=5 // pred_region
      %s122 = ssub.s32 %s7, 1
      %s123 = sadd.s32 %s17, %s18
      %s124 = smul.u32 8, %s19
      %p125 = scmp.lt.s32.totalorder %s123, 1
      %s126 = scalar_select %p125, %s123, 1
      %p127 = scmp.lt.s32.totalorder %s124, 7
      %s128 = scalar_select %p127, %s124, 7
      %s129 = smul.addr %s126, 8
      %s130 = sadd.s32 %s128, %s129
      %s131 = smul.addr %s130, 8
      %s132 = scalar_lea.vmem %s0, %s131
      %p133 = pneg %p56
      %p134 = pneg %p53
      %p135 = pneg %p82
      %p136 = pneg %p79
      %p137 = scmp.lt.s32.totalorder %s17, 1
      %s138 = scalar_select %p137, %s17, 1
      %s139 = scalar_lea.vmem %s1, %s138
      %s140 = sadd.s32 %s17, %s18
      %s141 = smul.u32 8, %s19
      %p142 = scmp.lt.s32.totalorder %s140, 1
      %s143 = scalar_select %p142, %s140, 1
      %p144 = scmp.lt.s32.totalorder %s141, 7
      %s145 = scalar_select %p144, %s141, 7
      %s146 = smul.addr %s143, 8
      %s147 = sadd.s32 %s145, %s146
      %s148 = smul.addr %s147, 8
      %s149 = scalar_lea.vmem %s0, %s148
      %s150 = sadd.s32 %s17, %s18
      %s151 = smul.u32 8, %s19
      %p152 = scmp.lt.s32.totalorder %s17, 1
      %s153 = scalar_select %p152, %s17, 1
      %s154 = scalar_lea.vmem %s1, %s153
      %p155 = scmp.eq.s32.totalorder %s18, 0
      %p156 = scmp.eq.s32.totalorder %s19, 0
      %p157 = pnand %p155, %p156
      %p158 = pneg %p157
      // Predicated region
      $region25: #{tpu_custom_call.1} parent=23 // pred_check
        _
      $region26: #{tpu_custom_call.1} parent=23 // pred_check_branch
        %160 = sbr.rel (%p157) target = $region28
      $region27: #{tpu_custom_call.1} parent=23 // pred_region
        %vm161 = vcmask 122880
        %162 = vst.msk [vmem:[#allocation3] sm:$0x1] %vm161, 0.0
      $region28: #{tpu_custom_call.1} parent=23 // pred_fallthru
        _
      // Predicated region
      $region29: #{tpu_custom_call.1} parent=23 // pred_check
        %p163 = pneg %p156
      $region30: #{tpu_custom_call.1} parent=23 // pred_check_branch
        %165 = sbr.rel (%p163) target = $region32
      $region31: #{tpu_custom_call.1} parent=23 // pred_region
        %vm166 = vcmask 122880
        %167 = vst.msk [vmem:[#allocation2] sm:$0x1] %vm166, 0.0
      $region32: #{tpu_custom_call.1} parent=23 // pred_fallthru
        _
      %v168 = vld [vmem:[%s149] sm:$0xff]
      %v169 = vld [vmem:[%s149 + $0x8] sm:$0xff]
      %v170 = vld [vmem:[%s149 + $0x10] sm:$0xff]
      %v171 = vld [vmem:[%s149 + $0x18] sm:$0xff]
      %v172 = vld [vmem:[%s149 + $0x20] sm:$0xff]
      %v173 = vld [vmem:[%s149 + $0x28] sm:$0xff]
      %v174 = vld [vmem:[%s149 + $0x30] sm:$0xff]
      %v175 = vld [vmem:[%s149 + $0x38] sm:$0xff]
      %v176 = vld [vmem:[#allocation2] sm:$0x1]
      %vm177 = vcmask 130048
      %v178 = vsel %vm177, %v168, 0.0
      %v179 = vsel %vm177, %v169, 0.0
      %v180 = vadd.f32 %v178, %v179
      %v181 = vsel %vm177, %v170, 0.0
      %v182 = vadd.f32 %v180, %v181
      %v183 = vsel %vm177, %v171, 0.0
      %v184 = vadd.f32 %v182, %v183
      %v185 = vsel %vm177, %v172, 0.0
      %v186 = vadd.f32 %v184, %v185
      %v187 = vsel %vm177, %v173, 0.0
      %v188 = vadd.f32 %v186, %v187
      %v189 = vsel %vm177, %v174, 0.0
      %v190 = vadd.f32 %v188, %v189
      %v191 = vsel %vm177, %v175, 0.0
      %v192 = vadd.f32 %v190, %v191
      %v193 = vrot.slane %v192, 4
      %v194 = vadd.f32 %v192, %v193
      %v195 = vrot.slane %v194, 2
      %v196 = vadd.f32 %v194, %v195
      %v197 = vrot.slane %v196, 1
      %v198 = vadd.f32 %v196, %v197
      %v199 = vadd.f32 %v176, %v198
      %vm200 = vcmask 122880
      %201 = vst.msk [vmem:[#allocation2] sm:$0x1] %vm200, %v199
      // Predicated region
      $region33: #{tpu_custom_call.1} parent=23 // pred_check
        %p202 = pneg %p156
      $region34: #{tpu_custom_call.1} parent=23 // pred_check_branch
        %204 = sbr.rel (%p202) target = $region36
      $region35: #{tpu_custom_call.1} parent=23 // pred_region
        %v205 = vld [vmem:[#allocation2] sm:$0x1]
        %v206 = vmul.f32 %v205, 0.0625
        %v207 = vadd.f32 %v206, 1e-07
        %v208 = vlog2.pop %v207
        %v209 = vmul.f32 %v208, 0.6931472
        %v210 = vld [vmem:[#allocation3] sm:$0x1]
        %v211 = vadd.f32 %v209, 0.0
        %v212 = vadd.f32 %v210, %v211
        %213 = vst.msk [vmem:[#allocation3] sm:$0x1] %vm200, %v212
      $region36: #{tpu_custom_call.1} parent=23 // pred_fallthru
        _
      // Predicated region
      $region37: #{tpu_custom_call.1} parent=23 // pred_check
        _
      $region38: #{tpu_custom_call.1} parent=23 // pred_check_branch
        %215 = sbr.rel (%p157) target = $region40
      $region39: #{tpu_custom_call.1} parent=23 // pred_region
        %v216 = vld [vmem:[#allocation3] sm:$0x1]
        %v217 = vsel %vm200, %v216, 0.0
        %218 = vadd.xlane.f32.xlu0 %v217
        %v219 = vpop.xlane.xlu0 %218
        %v220 = vrot.slane %v219, 4
        %v221 = vadd.f32 %v219, %v220
        %v222 = vrot.slane %v221, 2
        %v223 = vadd.f32 %v221, %v222
        %v224 = vrot.slane %v223, 1
        %v225 = vadd.f32 %v223, %v224
        %s226 = vtos %v225
        %v227 = vstv %s226
        %vm228 = vcmask 0
        %229 = vst.msk [vmem:[%s154] sm:$0x1] %vm228, %v227
      $region40: #{tpu_custom_call.1} parent=23 // pred_fallthru
        _
      %p230 = scmp.lt.s32.totalorder %s17, 1
      %s231 = scalar_select %p230, %s17, 1
      %s232 = scalar_lea.vmem %s1, %s231
      // Predicated region
      $region41: #{tpu_custom_call.1} parent=23 // pred_check
        %p233 = pneg %p79
      $region42: #{tpu_custom_call.1} parent=23 // pred_check_branch
        %235 = sbr.rel (%p233) target = $region44
      $region43: #{tpu_custom_call.1} parent=23 // pred_region
        _
      $region44: #{tpu_custom_call.1} parent=23 // pred_fallthru
        _
    $region24: #{tpu_custom_call.1} parent=5 // pred_fallthru
      _
    %p236 = scmp.le.s32.totalorder 2, %s7
    // Predicated region
    $region45: #{tpu_custom_call.1} parent=5 // pred_check
      %p237 = pneg %p236
    $region46: #{tpu_custom_call.1} parent=5 // pred_check_branch
      %239 = sbr.rel (%p237) target = $region48
    $region47: #{tpu_custom_call.1} parent=5 // pred_region
      %s240 = ssub.s32 %s7, 2
      // Predicated region
      $region49: #{tpu_custom_call.1} parent=47 // pred_check
        %p241 = pneg %p85
      $region50: #{tpu_custom_call.1} parent=47 // pred_check_branch
        %243 = sbr.rel (%p241) target = $region52
      $region51: #{tpu_custom_call.1} parent=47 // pred_region
        %p244 = scmp.lt.s32.totalorder %s20, 1
        %s245 = scalar_select %p244, %s20, 1
        %s246 = scalar_lea.vmem %s1, %s245
      $region52: #{tpu_custom_call.1} parent=47 // pred_fallthru
        _
    $region48: #{tpu_custom_call.1} parent=5 // pred_fallthru
      _
  $region6: #{tpu_custom_call.1} parent=0 // loop_footer
    %s11 = sadd.s32 1, %s7
  $region7: #{tpu_custom_call.1} parent=0 // loop_footer_branch
    %6 = sbr.rel target = $region3
  $region8: #{tpu_custom_call.1} parent=0 // loop_exit
    _

</llo_original>
